<compile_context>
chip_gen: v6e
topology: v6e:2x2x1
jax: 0.10.0
libtpu: 0.0.40
codegen_flags: <defaults>
</compile_context>

<pallas_src>
import jax
import jax.numpy as jnp
from jax.experimental import pallas as pl
from jax.experimental.pallas import tpu as pltpu


def _fused4_linear_kernel(x_ref, w_ref, o_ref):
    # x_ref: (10, 4)   f32, column g = g-th randn(10) activation vector
    # w_ref: (16, 128) f32, w_ref[i, 10g+o] = W[g, o, i] (i < 10),
    #                       w_ref[10, 10g+o] = b[g, o], rest zero (tile-aligned)
    # o_ref: (1, 128)  f32, lanes [0:40) = concat([v1, v2, v3, v4])
    o_ref[...] = jnp.zeros_like(o_ref)              # define padding lanes (one full store)
    for g in range(4):                              # statically unrolled, VPU-only
        xg = x_ref[:, g:g + 1]                      # (10, 1)  activation column
        wg = w_ref[0:10, 10 * g:10 * (g + 1)]       # (10, 10) weights (in-dim on sublanes)
        bg = w_ref[10:11, 10 * g:10 * (g + 1)]      # (1, 10)  bias row
        vg = jnp.sum(xg * wg, axis=0, keepdims=True) + bg   # broadcast-mul + sublane reduce
        o_ref[:, 10 * g:10 * (g + 1)] = vg          # 10-lane store at lane offset 10g


def _fused4_linear(rand_cols, wlb):
    """One gridless Pallas call producing the final concatenated (1, 128) row."""
    return pl.pallas_call(
        _fused4_linear_kernel,
        out_shape=jax.ShapeDtypeStruct((1, 128), jnp.float32),
        in_specs=[
            pl.BlockSpec(memory_space=pltpu.MemorySpace.VMEM),
            pl.BlockSpec(memory_space=pltpu.MemorySpace.VMEM),
        ],
        out_specs=pl.BlockSpec(memory_space=pltpu.MemorySpace.VMEM),
        cost_estimate=pl.CostEstimate(
            flops=800, transcendentals=0, bytes_accessed=160 + 16 * 128 * 4 + 128 * 4
        ),
    )(rand_cols, wlb)


def pack_params(weights, biases):
    """One-time host-side parameter re-layout (outside forward).

    weights: (4, 10, 10) PyTorch-style (group, out_features, in_features)
    biases : (4, 10)
    Returns a single tile-aligned (16, 128) buffer with weights in rows 0..9,
    biases in row 10, zeros elsewhere.
    """
    wl = jnp.transpose(weights, (2, 0, 1)).reshape(10, 40)   # wl[i, 10g+o] = W[g,o,i]
    wlb = jnp.zeros((16, 128), jnp.float32)
    wlb = wlb.at[:10, :40].set(wl)
    wlb = wlb.at[10, :40].set(biases.reshape(40))
    return wlb


@jax.jit
def model_forward(x_unused, wlb, rand_cols):
    """Mirrors Model.forward.  `x_unused` is accepted (and ignored) exactly like
    the PyTorch module ignores its input `x`.

    rand_cols: (10, 4) -- deterministic stand-ins for the four torch.randn(10)
    draws (column g = g-th draw), already in the kernel's column layout so the
    forward pass contains no activation re-layout ops at all.
    """
    row = _fused4_linear(rand_cols, wlb)            # (1, 128) lane-dense result
    # see TODO(synk) above: axis-0 concat stands in for the invalid dim=1 cat;
    # the concatenation is already materialized by the kernel's lane layout.
    return row[0, :40]                              # (40,)


if __name__ == "__main__":
    key = jax.random.PRNGKey(0)
    k_w, k_b, k_r, k_x = jax.random.split(key, 4)

    # Deterministic parameter init (PyTorch Linear default is U(-1/sqrt(in), 1/sqrt(in)))
    bound = 1.0 / jnp.sqrt(10.0)
    weights = jax.random.uniform(k_w, (4, 10, 10), jnp.float32, -bound, bound)
    biases = jax.random.uniform(k_b, (4, 10), jnp.float32, -bound, bound)

    # Deterministic stand-ins for the four torch.randn(10) draws (column g = draw g).
    rand_cols = jax.random.normal(k_r, (10, 4), jnp.float32)

    # Module input (unused by forward, kept for interface parity)
    x = jax.random.normal(k_x, (2, 4, 16, 16), jnp.float32)

    # One-time parameter packing (weights + biases merged, tile-aligned).
    wlb = pack_params(weights, biases)

    out = model_forward(x, wlb, rand_cols)
    out = jax.block_until_ready(out)

    # Cross-check against a pure-JAX reference of the same math.
    ref = jnp.concatenate(
        [rand_cols[:, g] @ weights[g].T + biases[g] for g in range(4)], axis=0
    )
    assert out.shape == (40,)
    assert jnp.allclose(out, ref, atol=1e-5, rtol=1e-5)

    print("KERNEL_OK")
</pallas_src>

<mosaic_0001>
module attributes {stable_mosaic.version = 11 : i64} {
  func.func @_fused4_linear_kernel(%arg0: memref<10x4xf32, #tpu.memory_space<vmem>>, %arg1: memref<16x128xf32, #tpu.memory_space<vmem>>, %arg2: memref<1x128xf32, #tpu.memory_space<vmem>>) attributes {dimension_semantics = [], scalar_prefetch = 0 : i64, scratch_operands = 0 : i64, tpu.core_type = #tpu.core_type<tc>} {
    %cst = arith.constant 0.000000e+00 : f32
    %0 = vector.broadcast %cst : f32 to vector<1x128xf32>
    %c0 = arith.constant 0 : index
    %c0_0 = arith.constant 0 : index
    %1 = vector.load %arg2[%c0, %c0_0] : memref<1x128xf32, #tpu.memory_space<vmem>>, vector<1x128xf32>
    tpu.vector_store %arg2[%c0, %c0_0], %0 {strides = array<i32>} : memref<1x128xf32, #tpu.memory_space<vmem>>, vector<1x128xf32>,
    %c0_1 = arith.constant 0 : index
    %c0_2 = arith.constant 0 : index
    %2 = vector.load %arg0[%c0_1, %c0_2] : memref<10x4xf32, #tpu.memory_space<vmem>>, vector<10x1xf32>
    %c0_3 = arith.constant 0 : index
    %c0_4 = arith.constant 0 : index
    %3 = vector.load %arg1[%c0_3, %c0_4] : memref<16x128xf32, #tpu.memory_space<vmem>>, vector<10x10xf32>
    %c10 = arith.constant 10 : index
    %c0_5 = arith.constant 0 : index
    %4 = vector.load %arg1[%c10, %c0_5] : memref<16x128xf32, #tpu.memory_space<vmem>>, vector<1x10xf32>
    %5 = vector.broadcast %2 : vector<10x1xf32> to vector<10x10xf32>
    %6 = arith.mulf %5, %3 : vector<10x10xf32>
    %cst_6 = arith.constant dense<0.000000e+00> : vector<10xf32>
    %7 = vector.multi_reduction <add>, %6, %cst_6 [0] : vector<10x10xf32> to vector<10xf32>
    %8 = vector.shape_cast %7 : vector<10xf32> to vector<1x10xf32>
    %9 = arith.addf %8, %4 : vector<1x10xf32>
    %c0_7 = arith.constant 0 : index
    %c0_8 = arith.constant 0 : index
    %10 = vector.load %arg2[%c0_7, %c0_8] : memref<1x128xf32, #tpu.memory_space<vmem>>, vector<1x10xf32>
    tpu.vector_store %arg2[%c0_7, %c0_8], %9 {strides = array<i32>} : memref<1x128xf32, #tpu.memory_space<vmem>>, vector<1x10xf32>,
    %c0_9 = arith.constant 0 : index
    %c1 = arith.constant 1 : index
    %11 = vector.load %arg0[%c0_9, %c1] : memref<10x4xf32, #tpu.memory_space<vmem>>, vector<10x1xf32>
    %c0_10 = arith.constant 0 : index
    %c10_11 = arith.constant 10 : index
    %12 = vector.load %arg1[%c0_10, %c10_11] : memref<16x128xf32, #tpu.memory_space<vmem>>, vector<10x10xf32>
    %c10_12 = arith.constant 10 : index
    %c10_13 = arith.constant 10 : index
    %13 = vector.load %arg1[%c10_12, %c10_13] : memref<16x128xf32, #tpu.memory_space<vmem>>, vector<1x10xf32>
    %14 = vector.broadcast %11 : vector<10x1xf32> to vector<10x10xf32>
    %15 = arith.mulf %14, %12 : vector<10x10xf32>
    %cst_14 = arith.constant dense<0.000000e+00> : vector<10xf32>
    %16 = vector.multi_reduction <add>, %15, %cst_14 [0] : vector<10x10xf32> to vector<10xf32>
    %17 = vector.shape_cast %16 : vector<10xf32> to vector<1x10xf32>
    %18 = arith.addf %17, %13 : vector<1x10xf32>
    %c0_15 = arith.constant 0 : index
    %c10_16 = arith.constant 10 : index
    %19 = vector.load %arg2[%c0_15, %c10_16] : memref<1x128xf32, #tpu.memory_space<vmem>>, vector<1x10xf32>
    tpu.vector_store %arg2[%c0_15, %c10_16], %18 {strides = array<i32>} : memref<1x128xf32, #tpu.memory_space<vmem>>, vector<1x10xf32>,
    %c0_17 = arith.constant 0 : index
    %c2 = arith.constant 2 : index
    %20 = vector.load %arg0[%c0_17, %c2] : memref<10x4xf32, #tpu.memory_space<vmem>>, vector<10x1xf32>
    %c0_18 = arith.constant 0 : index
    %c20 = arith.constant 20 : index
    %21 = vector.load %arg1[%c0_18, %c20] : memref<16x128xf32, #tpu.memory_space<vmem>>, vector<10x10xf32>
    %c10_19 = arith.constant 10 : index
    %c20_20 = arith.constant 20 : index
    %22 = vector.load %arg1[%c10_19, %c20_20] : memref<16x128xf32, #tpu.memory_space<vmem>>, vector<1x10xf32>
    %23 = vector.broadcast %20 : vector<10x1xf32> to vector<10x10xf32>
    %24 = arith.mulf %23, %21 : vector<10x10xf32>
    %cst_21 = arith.constant dense<0.000000e+00> : vector<10xf32>
    %25 = vector.multi_reduction <add>, %24, %cst_21 [0] : vector<10x10xf32> to vector<10xf32>
    %26 = vector.shape_cast %25 : vector<10xf32> to vector<1x10xf32>
    %27 = arith.addf %26, %22 : vector<1x10xf32>
    %c0_22 = arith.constant 0 : index
    %c20_23 = arith.constant 20 : index
    %28 = vector.load %arg2[%c0_22, %c20_23] : memref<1x128xf32, #tpu.memory_space<vmem>>, vector<1x10xf32>
    tpu.vector_store %arg2[%c0_22, %c20_23], %27 {strides = array<i32>} : memref<1x128xf32, #tpu.memory_space<vmem>>, vector<1x10xf32>,
    %c0_24 = arith.constant 0 : index
    %c3 = arith.constant 3 : index
    %29 = vector.load %arg0[%c0_24, %c3] : memref<10x4xf32, #tpu.memory_space<vmem>>, vector<10x1xf32>
    %c0_25 = arith.constant 0 : index
    %c30 = arith.constant 30 : index
    %30 = vector.load %arg1[%c0_25, %c30] : memref<16x128xf32, #tpu.memory_space<vmem>>, vector<10x10xf32>
    %c10_26 = arith.constant 10 : index
    %c30_27 = arith.constant 30 : index
    %31 = vector.load %arg1[%c10_26, %c30_27] : memref<16x128xf32, #tpu.memory_space<vmem>>, vector<1x10xf32>
    %32 = vector.broadcast %29 : vector<10x1xf32> to vector<10x10xf32>
    %33 = arith.mulf %32, %30 : vector<10x10xf32>
    %cst_28 = arith.constant dense<0.000000e+00> : vector<10xf32>
    %34 = vector.multi_reduction <add>, %33, %cst_28 [0] : vector<10x10xf32> to vector<10xf32>
    %35 = vector.shape_cast %34 : vector<10xf32> to vector<1x10xf32>
    %36 = arith.addf %35, %31 : vector<1x10xf32>
    %c0_29 = arith.constant 0 : index
    %c30_30 = arith.constant 30 : index
    %37 = vector.load %arg2[%c0_29, %c30_30] : memref<1x128xf32, #tpu.memory_space<vmem>>, vector<1x10xf32>
    tpu.vector_store %arg2[%c0_29, %c30_30], %36 {strides = array<i32>} : memref<1x128xf32, #tpu.memory_space<vmem>>, vector<1x10xf32>,
    return
  }
}

</mosaic_0001>

<llo_original>
// kernel: model_forward.1
$region0: #{model_forward.1}
  #allocation0 [shape = 'u32[]', space=smem, size = 0x4, offset = 0x4, fixed_abs, tag = 'smem constant byte address 0x4 - core index']
  #allocation1 [shape = 'u32[144,128]{1,0:T(1,128)}', space=vmem, size = 0x12000, scoped, tag = 'internal scratch']
  %s0 = inlined_call_operand.vmem [shape: f32[10,4], index: 0, kind: input, shape index: {}]
  %s1 = inlined_call_operand.vmem [shape: f32[16,128], index: 1, kind: input, shape index: {}]
  %s2 = inlined_call_operand.vmem [shape: f32[1,128], index: 2, kind: output, shape index: {}]
  %s3 = sld [smem:[#allocation0]]
  $region18: #{model_forward.1} parent=0
    _
  %s5 = ssub.s32 1, %s3
  %s6 = scalar_select 0, %s5, %s3
  // Predicated region
  $region2: #{model_forward.1} parent=0 // pred_check
    _
  $region3: #{model_forward.1} parent=0 // pred_check_branch
    %8 = sbr.rel (0) target = $region5
  $region4: #{model_forward.1} parent=0 // pred_region
    _
  $region5: #{model_forward.1} parent=0 // pred_fallthru
    _
  // Predicated region
  $region6: #{model_forward.1} parent=0 // pred_check
    _
  $region7: #{model_forward.1} parent=0 // pred_check_branch
    %10 = sbr.rel (0) target = $region9
  $region8: #{model_forward.1} parent=0 // pred_region
    _
  $region9: #{model_forward.1} parent=0 // pred_fallthru
    _
  %11 = vst [vmem:[%s2] sm:$0x1] 0.0
  %v12 = vld [vmem:[%s0] sm:$0xff]
  %v13 = vld [vmem:[%s0 + $0x8] sm:$0x3]
  %v14 = vld [vmem:[%s1] sm:$0xff]
  %v15 = vld [vmem:[%s1 + $0x8] sm:$0x3]
  %v16 = vld [vmem:[%s1 + $0xa] sm:$0x1]
  %18 = vset.pattern.permute.xlu0 0
  %19 = vperm.xlu0 %18, %v12
  %v20 = vpop.permute.xlu0 %19
  %23 = vset.pattern.permute.xlu0 0
  %24 = vperm.xlu0 %23, %v13
  %v25 = vpop.permute.xlu0 %24
  %v27 = vmul.f32 %v20, %v14
  %v28 = vmul.f32 %v25, %v15
  %vm29 = vcmask 80896
  %v30 = vsel %vm29, %v27, 0.0
  %vm31 = vcmask 74752
  %v32 = vsel %vm31, %v28, 0.0
  %v33 = vadd.f32 %v30, %v32
  %v34 = vrot.slane %v33, 4
  %v35 = vadd.f32 %v33, %v34
  %v36 = vrot.slane %v35, 2
  %v37 = vadd.f32 %v35, %v36
  %v38 = vrot.slane %v37, 1
  %v39 = vadd.f32 %v37, %v38
  %v40 = vadd.f32 %v39, %v16
  %vm41 = vcmask 73728
  %42 = vst.msk [vmem:[%s2] sm:$0x1] %vm41, %v40
  %v43 = vld [vmem:[%s0] sm:$0xff]
  %v44 = vld [vmem:[%s0 + $0x8] sm:$0x3]
  %v45 = vld [vmem:[%s1] sm:$0xff]
  %v46 = vld [vmem:[%s1 + $0x8] sm:$0x3]
  %v47 = vld [vmem:[%s1 + $0xa] sm:$0x1]
  %49 = vset.pattern.permute.xlu0 1
  %50 = vperm.xlu0 %49, %v43
  %v51 = vpop.permute.xlu0 %50
  %54 = vset.pattern.permute.xlu0 1
  %55 = vperm.xlu0 %54, %v44
  %v56 = vpop.permute.xlu0 %55
  %v58 = vmul.f32 %v51, %v45
  %v59 = vmul.f32 %v56, %v46
  %vm60 = vcmask 162896
  %v61 = vsel %vm60, %v58, 0.0
  %vm62 = vcmask 156752
  %v63 = vsel %vm62, %v59, 0.0
  %v64 = vadd.f32 %v61, %v63
  %v65 = vrot.slane %v64, 4
  %v66 = vadd.f32 %v64, %v65
  %v67 = vrot.slane %v66, 2
  %v68 = vadd.f32 %v66, %v67
  %v69 = vrot.slane %v68, 1
  %v70 = vadd.f32 %v68, %v69
  %v71 = vadd.f32 %v70, %v47
  %vm72 = vcmask 155728
  %73 = vst.msk [vmem:[%s2] sm:$0x1] %vm72, %v71
  %v74 = vld [vmem:[%s0] sm:$0xff]
  %v75 = vld [vmem:[%s0 + $0x8] sm:$0x3]
  %v76 = vld [vmem:[%s1] sm:$0xff]
  %v77 = vld [vmem:[%s1 + $0x8] sm:$0x3]
  %v78 = vld [vmem:[%s1 + $0xa] sm:$0x1]
  %80 = vset.pattern.permute.xlu0 2
  %81 = vperm.xlu0 %80, %v74
  %v82 = vpop.permute.xlu0 %81
  %85 = vset.pattern.permute.xlu0 2
  %86 = vperm.xlu0 %85, %v75
  %v87 = vpop.permute.xlu0 %86
  %v89 = vmul.f32 %v82, %v76
  %v90 = vmul.f32 %v87, %v77
  %vm91 = vcmask 244896
  %v92 = vsel %vm91, %v89, 0.0
  %vm93 = vcmask 238752
  %v94 = vsel %vm93, %v90, 0.0
  %v95 = vadd.f32 %v92, %v94
  %v96 = vrot.slane %v95, 4
  %v97 = vadd.f32 %v95, %v96
  %v98 = vrot.slane %v97, 2
  %v99 = vadd.f32 %v97, %v98
  %v100 = vrot.slane %v99, 1
  %v101 = vadd.f32 %v99, %v100
  %v102 = vadd.f32 %v101, %v78
  %vm103 = vcmask 237728
  %104 = vst.msk [vmem:[%s2] sm:$0x1] %vm103, %v102
  %v105 = vld [vmem:[%s0] sm:$0xff]
  %v106 = vld [vmem:[%s0 + $0x8] sm:$0x3]
  %v107 = vld [vmem:[%s1] sm:$0xff]
  %v108 = vld [vmem:[%s1 + $0x8] sm:$0x3]
  %v109 = vld [vmem:[%s1 + $0xa] sm:$0x1]
  %111 = vset.pattern.permute.xlu0 3
  %112 = vperm.xlu0 %111, %v105
  %v113 = vpop.permute.xlu0 %112
  %116 = vset.pattern.permute.xlu0 3
  %117 = vperm.xlu0 %116, %v106
  %v118 = vpop.permute.xlu0 %117
  %v120 = vmul.f32 %v113, %v107
  %v121 = vmul.f32 %v118, %v108
  %vm122 = vcmask 326896
  %v123 = vsel %vm122, %v120, 0.0
  %vm124 = vcmask 320752
  %v125 = vsel %vm124, %v121, 0.0
  %v126 = vadd.f32 %v123, %v125
  %v127 = vrot.slane %v126, 4
  %v128 = vadd.f32 %v126, %v127
  %v129 = vrot.slane %v128, 2
  %v130 = vadd.f32 %v128, %v129
  %v131 = vrot.slane %v130, 1
  %v132 = vadd.f32 %v130, %v131
  %v133 = vadd.f32 %v132, %v109
  %vm134 = vcmask 319728
  %135 = vst.msk [vmem:[%s2] sm:$0x1] %vm134, %v133
  // Predicated region
  $region10: #{model_forward.1} parent=0 // pred_check
    _
  $region11: #{model_forward.1} parent=0 // pred_check_branch
    %137 = sbr.rel (0) target = $region13
  $region12: #{model_forward.1} parent=0 // pred_region
    _
  $region13: #{model_forward.1} parent=0 // pred_fallthru
    _
  // Predicated region
  $region14: #{model_forward.1} parent=0 // pred_check
    _
  $region15: #{model_forward.1} parent=0 // pred_check_branch
    %139 = sbr.rel (0) target = $region17
  $region16: #{model_forward.1} parent=0 // pred_region
    _
  $region17: #{model_forward.1} parent=0 // pred_fallthru
    _

</llo_original>
